<compile_context>
chip_gen: v6e
topology: v6e:2x2x1
jax: 0.10.0
libtpu: 0.0.40
codegen_flags: <defaults>
</compile_context>

<pallas_src>
import functools

import jax
import jax.numpy as jnp
from jax.experimental import pallas as pl
from jax.experimental.pallas import tpu as pltpu

LN_EPS = 1e-5
LANE = 128


def _round_up(x, m):
    return (x + m - 1) // m * m


def _layernorm_padded(h, gamma, beta, n_true):
    """LayerNorm over the first n_true lanes of h (remaining lanes are 0).

    Uses E[h^2] - mu^2 with an explicit 1/n_true divisor so zero-padded lanes
    contribute nothing to the statistics; gamma/beta are 0 in the padded
    region so padded lanes come out exactly 0.  Variance is clamped at 0 to
    guard against one-pass cancellation.
    """
    inv_n = 1.0 / n_true
    s = jnp.sum(h, axis=-1, keepdims=True)
    ss = jnp.sum(h * h, axis=-1, keepdims=True)
    mu = s * inv_n
    var = jnp.maximum(ss * inv_n - mu * mu, 0.0)
    return (h - mu) * jax.lax.rsqrt(var + LN_EPS) * gamma + beta


def actor_kernel(x_ref, w1_ref, w2_ref, wmu_ref, vec_ref, o_ref, *,
                 f1p, f2p, ap, f1_true, f2_true):
    # Packed per-feature vectors: one (8, VMAX) f32 block, rows sliced here.
    b1 = vec_ref[0:1, 0:f1p]
    g1 = vec_ref[1:2, 0:f1p]
    be1 = vec_ref[2:3, 0:f1p]
    b2 = vec_ref[3:4, 0:f2p]
    g2 = vec_ref[4:5, 0:f2p]
    be2 = vec_ref[5:6, 0:f2p]
    bmu = vec_ref[6:7, 0:ap]

    # fc1 -> LayerNorm -> relu (MXU operands in weight dtype, accumulation f32)
    h = jnp.dot(x_ref[...], w1_ref[...],
                preferred_element_type=jnp.float32) + b1
    h = _layernorm_padded(h, g1, be1, f1_true)
    h = jnp.maximum(h, 0.0)

    # fc2 -> LayerNorm -> relu
    h = jnp.dot(h.astype(w2_ref.dtype), w2_ref[...],
                preferred_element_type=jnp.float32) + b2
    h = _layernorm_padded(h, g2, be2, f2_true)
    h = jnp.maximum(h, 0.0)

    # mu -> tanh  (lane-dense (block_b, AP) store; pad lanes are tanh(0)=0)
    out = jnp.dot(h.astype(wmu_ref.dtype), wmu_ref[...],
                  preferred_element_type=jnp.float32) + bmu
    o_ref[...] = jnp.tanh(out).astype(o_ref.dtype)


def prepare_actor_params(params, *, use_bf16=True):
    """One-time preparation: lane-pad to 128, cast MXU operands, pack vectors.

    Returns (arrays, dims):
      arrays = (w1p, w2p, wmup, vecs)     -- device arrays, reused every call
      dims   = (D_in, F1, F2, A, F1P, F2P, AP, VMAX)  -- static Python ints
    """
    w1, b1, g1, be1, w2, b2, g2, be2, wmu, bmu = params
    D_in, F1 = w1.shape
    F2 = w2.shape[1]
    A = wmu.shape[1]
    F1P = _round_up(F1, LANE)
    F2P = _round_up(F2, LANE)
    AP = _round_up(A, LANE)
    VMAX = max(F1P, F2P, AP)

    mm_dtype = jnp.bfloat16 if use_bf16 else jnp.float32

    def pad2(a, rows, cols):
        r, c = a.shape
        return jnp.pad(a, ((0, rows - r), (0, cols - c)))

    # Zero-pad to lane-dense shapes; zeros in the pad (weights, biases, gamma,
    # beta) keep padded activation lanes exactly 0 end-to-end.
    w1p = pad2(w1, D_in, F1P).astype(mm_dtype)
    w2p = pad2(w2, F1P, F2P).astype(mm_dtype)
    wmup = pad2(wmu, F2P, AP).astype(mm_dtype)

    def row(v):
        return pad2(v.reshape(1, -1).astype(jnp.float32), 1, VMAX)

    vecs = jnp.concatenate(
        [row(b1), row(g1), row(be1),
         row(b2), row(g2), row(be2),
         row(bmu), jnp.zeros((1, VMAX), jnp.float32)],
        axis=0)  # (8, VMAX)

    arrays = (w1p, w2p, wmup, vecs)
    arrays = jax.tree_util.tree_map(jax.block_until_ready, arrays)
    dims = (D_in, F1, F2, A, F1P, F2P, AP, VMAX)
    return arrays, dims


@functools.partial(jax.jit, static_argnames=("dims", "block_b"))
def actor_forward(state, arrays, dims, *, block_b=None):
    w1p, w2p, wmup, vecs = arrays
    D_in, F1, F2, A, F1P, F2P, AP, VMAX = dims
    B = state.shape[0]

    mm_dtype = w1p.dtype
    use_bf16 = mm_dtype == jnp.bfloat16
    out_dtype = jnp.bfloat16 if use_bf16 else jnp.float32

    # Cast state once in the wrapper (halves x DMA on the bf16 path).
    x = state.astype(mm_dtype)

    # Batch blocking: single step for small B; for large B use >=2 blocks
    # (v7x 2-TC sharding via the "parallel" axis), up to 1024 rows per block.
    if block_b is None:
        if B <= 256:
            block_b = B
        else:
            block_b = min(1024, _round_up((B + 1) // 2, 8))
    Bp = _round_up(B, block_b)
    if Bp != B:
        x = jnp.pad(x, ((0, Bp - B), (0, 0)))
    grid = (Bp // block_b,)

    kernel = functools.partial(actor_kernel, f1p=F1P, f2p=F2P, ap=AP,
                               f1_true=F1, f2_true=F2)

    def rep(shape):  # weights / packed vectors: same block every grid step
        return pl.BlockSpec(shape, lambda i: (0, 0))

    flops = 2 * Bp * (D_in * F1P + F1P * F2P + F2P * AP)
    transcendentals = Bp * (AP + 2)  # tanh per output elem + 2 rsqrt per row
    bytes_accessed = (x.size * x.dtype.itemsize
                      + w1p.size * w1p.dtype.itemsize
                      + w2p.size * w2p.dtype.itemsize
                      + wmup.size * wmup.dtype.itemsize
                      + vecs.size * vecs.dtype.itemsize
                      + Bp * AP * jnp.dtype(out_dtype).itemsize)

    out = pl.pallas_call(
        kernel,
        out_shape=jax.ShapeDtypeStruct((Bp, AP), out_dtype),
        grid_spec=pltpu.PrefetchScalarGridSpec(
            num_scalar_prefetch=0,
            grid=grid,
            in_specs=[
                pl.BlockSpec((block_b, D_in), lambda i: (i, 0)),  # state
                rep((D_in, F1P)),                                  # fc1 W
                rep((F1P, F2P)),                                   # fc2 W
                rep((F2P, AP)),                                    # mu  W
                rep((8, VMAX)),                                    # packed vecs
            ],
            out_specs=pl.BlockSpec((block_b, AP), lambda i: (i, 0)),
        ),
        compiler_params=pltpu.CompilerParams(
            dimension_semantics=("parallel",)),
        cost_estimate=pl.CostEstimate(
            flops=flops,
            transcendentals=transcendentals,
            bytes_accessed=bytes_accessed),
    )(x, w1p, w2p, wmup, vecs)

    return out[:B, :A].astype(jnp.float32)


def init_actor_params(key, input_dims, fc1_dims, fc2_dims, n_actions):
    """Deterministic init mirroring the torch module's __init__.

    torch Linear weight is (out, in); f = 1/sqrt(weight.size(0)) = 1/sqrt(out).
    Here weights are stored transposed as (in, out).
    """
    k1w, k1b, k2w, k2b, k3w, k3b = jax.random.split(key, 6)

    f1 = 1.0 / jnp.sqrt(jnp.float32(fc1_dims))
    w1 = jax.random.uniform(k1w, (input_dims, fc1_dims), jnp.float32, -f1, f1)
    b1 = jax.random.uniform(k1b, (1, fc1_dims), jnp.float32, -f1, f1)
    g1 = jnp.ones((1, fc1_dims), jnp.float32)     # LayerNorm weight
    be1 = jnp.zeros((1, fc1_dims), jnp.float32)   # LayerNorm bias

    f2 = 1.0 / jnp.sqrt(jnp.float32(fc2_dims))
    w2 = jax.random.uniform(k2w, (fc1_dims, fc2_dims), jnp.float32, -f2, f2)
    b2 = jax.random.uniform(k2b, (1, fc2_dims), jnp.float32, -f2, f2)
    g2 = jnp.ones((1, fc2_dims), jnp.float32)
    be2 = jnp.zeros((1, fc2_dims), jnp.float32)

    f3 = 0.003
    wmu = jax.random.uniform(k3w, (fc2_dims, n_actions), jnp.float32, -f3, f3)
    bmu = jax.random.uniform(k3b, (1, n_actions), jnp.float32, -f3, f3)

    return (w1, b1, g1, be1, w2, b2, g2, be2, wmu, bmu)


def actor_reference(state, params):
    """Pure-JAX reference with torch LayerNorm semantics (population var)."""
    w1, b1, g1, be1, w2, b2, g2, be2, wmu, bmu = params

    def ln(h, g, be):
        mu = jnp.mean(h, axis=-1, keepdims=True)
        var = jnp.mean((h - mu) * (h - mu), axis=-1, keepdims=True)
        return (h - mu) * jax.lax.rsqrt(var + LN_EPS) * g + be

    h = jnp.maximum(ln(state @ w1 + b1, g1, be1), 0.0)
    h = jnp.maximum(ln(h @ w2 + b2, g2, be2), 0.0)
    return jnp.tanh(h @ wmu + bmu)


if __name__ == "__main__":
    # Shapes consistent with the module: input_dims=(32,), fc1=64, fc2=64,
    # n_actions=8, batch=16.
    B, D_IN, FC1, FC2, N_ACT = 16, 32, 64, 64, 8

    key = jax.random.PRNGKey(0)
    k_state, k_params = jax.random.split(key)

    state = jax.random.normal(k_state, (B, D_IN), jnp.float32)
    params = init_actor_params(k_params, D_IN, FC1, FC2, N_ACT)

    ref = actor_reference(state, params)

    # Exact f32 path: must match the reference tightly.
    arrays_f32, dims = prepare_actor_params(params, use_bf16=False)
    out_f32 = jax.block_until_ready(actor_forward(state, arrays_f32, dims))
    assert out_f32.shape == (B, N_ACT)
    assert jnp.allclose(out_f32, ref, atol=1e-5, rtol=1e-5), "f32 mismatch"

    # Default fast path: bf16 MXU operands + bf16 writeback, f32 vector math.
    arrays_bf16, dims = prepare_actor_params(params, use_bf16=True)
    out = jax.block_until_ready(actor_forward(state, arrays_bf16, dims))
    assert out.shape == (B, N_ACT)
    assert jnp.allclose(out, ref, atol=1e-2, rtol=5e-2), "bf16 mismatch"

    print("KERNEL_OK")
</pallas_src>

<mosaic_0001>
module attributes {stable_mosaic.version = 11 : i64} {
  func.func @actor_kernel(%arg0: i32, %arg1: memref<16x32xf32, #tpu.memory_space<vmem>>, %arg2: memref<32x128xf32, #tpu.memory_space<vmem>>, %arg3: memref<128x128xf32, #tpu.memory_space<vmem>>, %arg4: memref<128x128xf32, #tpu.memory_space<vmem>>, %arg5: memref<8x128xf32, #tpu.memory_space<vmem>>, %arg6: memref<16x128xf32, #tpu.memory_space<vmem>>) attributes {dimension_semantics = [#tpu.dimension_semantics<parallel>], iteration_bounds = array<i64: 1>, scalar_prefetch = 0 : i64, scratch_operands = 0 : i64, tpu.core_type = #tpu.core_type<tc>, window_params = [{transform_indices = @transform_0, window_bounds = array<i64: 16, 32>}, {pipeline_mode = #tpu.pipeline_mode<synchronous>, transform_indices = @transform_1, window_bounds = array<i64: 32, 128>}, {pipeline_mode = #tpu.pipeline_mode<synchronous>, transform_indices = @transform_2, window_bounds = array<i64: 128, 128>}, {pipeline_mode = #tpu.pipeline_mode<synchronous>, transform_indices = @transform_3, window_bounds = array<i64: 128, 128>}, {pipeline_mode = #tpu.pipeline_mode<synchronous>, transform_indices = @transform_4, window_bounds = array<i64: 8, 128>}, {transform_indices = @transform_5, window_bounds = array<i64: 16, 128>}]} {
    %c0 = arith.constant 0 : index
    %c0_0 = arith.constant 0 : index
    %0 = vector.load %arg5[%c0, %c0_0] : memref<8x128xf32, #tpu.memory_space<vmem>>, vector<1x128xf32>
    %c1 = arith.constant 1 : index
    %c0_1 = arith.constant 0 : index
    %1 = vector.load %arg5[%c1, %c0_1] : memref<8x128xf32, #tpu.memory_space<vmem>>, vector<1x128xf32>
    %c2 = arith.constant 2 : index
    %c0_2 = arith.constant 0 : index
    %2 = vector.load %arg5[%c2, %c0_2] : memref<8x128xf32, #tpu.memory_space<vmem>>, vector<1x128xf32>
    %c3 = arith.constant 3 : index
    %c0_3 = arith.constant 0 : index
    %3 = vector.load %arg5[%c3, %c0_3] : memref<8x128xf32, #tpu.memory_space<vmem>>, vector<1x128xf32>
    %c4 = arith.constant 4 : index
    %c0_4 = arith.constant 0 : index
    %4 = vector.load %arg5[%c4, %c0_4] : memref<8x128xf32, #tpu.memory_space<vmem>>, vector<1x128xf32>
    %c5 = arith.constant 5 : index
    %c0_5 = arith.constant 0 : index
    %5 = vector.load %arg5[%c5, %c0_5] : memref<8x128xf32, #tpu.memory_space<vmem>>, vector<1x128xf32>
    %c6 = arith.constant 6 : index
    %c0_6 = arith.constant 0 : index
    %6 = vector.load %arg5[%c6, %c0_6] : memref<8x128xf32, #tpu.memory_space<vmem>>, vector<1x128xf32>
    %c0_7 = arith.constant 0 : index
    %c0_8 = arith.constant 0 : index
    %7 = vector.load %arg1[%c0_7, %c0_8] : memref<16x32xf32, #tpu.memory_space<vmem>>, vector<16x32xf32>
    %c0_9 = arith.constant 0 : index
    %c0_10 = arith.constant 0 : index
    %8 = vector.load %arg2[%c0_9, %c0_10] : memref<32x128xf32, #tpu.memory_space<vmem>>, vector<32x128xf32>
    %cst = arith.constant dense<0.000000e+00> : vector<16x128xf32>
    %9 = tpu.matmul %7, %8, %cst {dimension_numbers = #tpu.dot_dimension_numbers<[1], [0], [0], [1], [0, 0, 1, 1], [], []>} : vector<16x32xf32>, vector<32x128xf32>, vector<16x128xf32> -> vector<16x128xf32>
    %10 = vector.broadcast %0 : vector<1x128xf32> to vector<16x128xf32>
    %11 = arith.addf %9, %10 : vector<16x128xf32>
    %cst_11 = arith.constant dense<0.000000e+00> : vector<16xf32>
    %12 = vector.multi_reduction <add>, %11, %cst_11 [1] : vector<16x128xf32> to vector<16xf32>
    %13 = vector.shape_cast %12 : vector<16xf32> to vector<16x1xf32>
    %14 = arith.mulf %11, %11 : vector<16x128xf32>
    %cst_12 = arith.constant dense<0.000000e+00> : vector<16xf32>
    %15 = vector.multi_reduction <add>, %14, %cst_12 [1] : vector<16x128xf32> to vector<16xf32>
    %16 = vector.shape_cast %15 : vector<16xf32> to vector<16x1xf32>
    %cst_13 = arith.constant 1.562500e-02 : f32
    %17 = vector.broadcast %cst_13 : f32 to vector<16x1xf32>
    %18 = arith.mulf %13, %17 : vector<16x1xf32>
    %cst_14 = arith.constant 1.562500e-02 : f32
    %19 = vector.broadcast %cst_14 : f32 to vector<16x1xf32>
    %20 = arith.mulf %16, %19 : vector<16x1xf32>
    %21 = arith.mulf %18, %18 : vector<16x1xf32>
    %22 = arith.subf %20, %21 : vector<16x1xf32>
    %cst_15 = arith.constant 0.000000e+00 : f32
    %23 = vector.broadcast %cst_15 : f32 to vector<16x1xf32>
    %24 = arith.maximumf %22, %23 : vector<16x1xf32>
    %25 = vector.broadcast %18 : vector<16x1xf32> to vector<16x128xf32>
    %26 = arith.subf %11, %25 : vector<16x128xf32>
    %cst_16 = arith.constant 9.99999974E-6 : f32
    %27 = vector.broadcast %cst_16 : f32 to vector<16x1xf32>
    %28 = arith.addf %24, %27 : vector<16x1xf32>
    %29 = math.rsqrt %28 : vector<16x1xf32>
    %30 = vector.broadcast %29 : vector<16x1xf32> to vector<16x128xf32>
    %31 = arith.mulf %26, %30 : vector<16x128xf32>
    %32 = vector.broadcast %1 : vector<1x128xf32> to vector<16x128xf32>
    %33 = arith.mulf %31, %32 : vector<16x128xf32>
    %34 = vector.broadcast %2 : vector<1x128xf32> to vector<16x128xf32>
    %35 = arith.addf %33, %34 : vector<16x128xf32>
    %cst_17 = arith.constant 0.000000e+00 : f32
    %36 = vector.broadcast %cst_17 : f32 to vector<16x128xf32>
    %37 = arith.maximumf %35, %36 : vector<16x128xf32>
    %c0_18 = arith.constant 0 : index
    %c0_19 = arith.constant 0 : index
    %38 = vector.load %arg3[%c0_18, %c0_19] : memref<128x128xf32, #tpu.memory_space<vmem>>, vector<128x128xf32>
    %cst_20 = arith.constant dense<0.000000e+00> : vector<16x128xf32>
    %39 = tpu.matmul %37, %38, %cst_20 {dimension_numbers = #tpu.dot_dimension_numbers<[1], [0], [0], [1], [0, 0, 1, 1], [], []>} : vector<16x128xf32>, vector<128x128xf32>, vector<16x128xf32> -> vector<16x128xf32>
    %40 = vector.broadcast %3 : vector<1x128xf32> to vector<16x128xf32>
    %41 = arith.addf %39, %40 : vector<16x128xf32>
    %cst_21 = arith.constant dense<0.000000e+00> : vector<16xf32>
    %42 = vector.multi_reduction <add>, %41, %cst_21 [1] : vector<16x128xf32> to vector<16xf32>
    %43 = vector.shape_cast %42 : vector<16xf32> to vector<16x1xf32>
    %44 = arith.mulf %41, %41 : vector<16x128xf32>
    %cst_22 = arith.constant dense<0.000000e+00> : vector<16xf32>
    %45 = vector.multi_reduction <add>, %44, %cst_22 [1] : vector<16x128xf32> to vector<16xf32>
    %46 = vector.shape_cast %45 : vector<16xf32> to vector<16x1xf32>
    %cst_23 = arith.constant 1.562500e-02 : f32
    %47 = vector.broadcast %cst_23 : f32 to vector<16x1xf32>
    %48 = arith.mulf %43, %47 : vector<16x1xf32>
    %cst_24 = arith.constant 1.562500e-02 : f32
    %49 = vector.broadcast %cst_24 : f32 to vector<16x1xf32>
    %50 = arith.mulf %46, %49 : vector<16x1xf32>
    %51 = arith.mulf %48, %48 : vector<16x1xf32>
    %52 = arith.subf %50, %51 : vector<16x1xf32>
    %cst_25 = arith.constant 0.000000e+00 : f32
    %53 = vector.broadcast %cst_25 : f32 to vector<16x1xf32>
    %54 = arith.maximumf %52, %53 : vector<16x1xf32>
    %55 = vector.broadcast %48 : vector<16x1xf32> to vector<16x128xf32>
    %56 = arith.subf %41, %55 : vector<16x128xf32>
    %cst_26 = arith.constant 9.99999974E-6 : f32
    %57 = vector.broadcast %cst_26 : f32 to vector<16x1xf32>
    %58 = arith.addf %54, %57 : vector<16x1xf32>
    %59 = math.rsqrt %58 : vector<16x1xf32>
    %60 = vector.broadcast %59 : vector<16x1xf32> to vector<16x128xf32>
    %61 = arith.mulf %56, %60 : vector<16x128xf32>
    %62 = vector.broadcast %4 : vector<1x128xf32> to vector<16x128xf32>
    %63 = arith.mulf %61, %62 : vector<16x128xf32>
    %64 = vector.broadcast %5 : vector<1x128xf32> to vector<16x128xf32>
    %65 = arith.addf %63, %64 : vector<16x128xf32>
    %cst_27 = arith.constant 0.000000e+00 : f32
    %66 = vector.broadcast %cst_27 : f32 to vector<16x128xf32>
    %67 = arith.maximumf %65, %66 : vector<16x128xf32>
    %c0_28 = arith.constant 0 : index
    %c0_29 = arith.constant 0 : index
    %68 = vector.load %arg4[%c0_28, %c0_29] : memref<128x128xf32, #tpu.memory_space<vmem>>, vector<128x128xf32>
    %cst_30 = arith.constant dense<0.000000e+00> : vector<16x128xf32>
    %69 = tpu.matmul %67, %68, %cst_30 {dimension_numbers = #tpu.dot_dimension_numbers<[1], [0], [0], [1], [0, 0, 1, 1], [], []>} : vector<16x128xf32>, vector<128x128xf32>, vector<16x128xf32> -> vector<16x128xf32>
    %70 = vector.broadcast %6 : vector<1x128xf32> to vector<16x128xf32>
    %71 = arith.addf %69, %70 : vector<16x128xf32>
    %72 = math.tanh %71 : vector<16x128xf32>
    %c0_31 = arith.constant 0 : index
    %c0_32 = arith.constant 0 : index
    %73 = vector.load %arg6[%c0_31, %c0_32] : memref<16x128xf32, #tpu.memory_space<vmem>>, vector<16x128xf32>
    tpu.vector_store %arg6[%c0_31, %c0_32], %72 {strides = array<i32>} : memref<16x128xf32, #tpu.memory_space<vmem>>, vector<16x128xf32>,
    return
  }
  func.func @transform_0(%arg0: i32) -> (i32, i32) {
    %c0_i32 = arith.constant 0 : i32
    %c0_i32_0 = arith.constant 0 : i32
    return %arg0, %c0_i32 : i32, i32
  }
  func.func @transform_1(%arg0: i32) -> (i32, i32) {
    %c0_i32 = arith.constant 0 : i32
    %c0_i32_0 = arith.constant 0 : i32
    %c0_i32_1 = arith.constant 0 : i32
    return %c0_i32, %c0_i32_0 : i32, i32
  }
  func.func @transform_2(%arg0: i32) -> (i32, i32) {
    %c0_i32 = arith.constant 0 : i32
    %c0_i32_0 = arith.constant 0 : i32
    %c0_i32_1 = arith.constant 0 : i32
    return %c0_i32, %c0_i32_0 : i32, i32
  }
  func.func @transform_3(%arg0: i32) -> (i32, i32) {
    %c0_i32 = arith.constant 0 : i32
    %c0_i32_0 = arith.constant 0 : i32
    %c0_i32_1 = arith.constant 0 : i32
    return %c0_i32, %c0_i32_0 : i32, i32
  }
  func.func @transform_4(%arg0: i32) -> (i32, i32) {
    %c0_i32 = arith.constant 0 : i32
    %c0_i32_0 = arith.constant 0 : i32
    %c0_i32_1 = arith.constant 0 : i32
    return %c0_i32, %c0_i32_0 : i32, i32
  }
  func.func @transform_5(%arg0: i32) -> (i32, i32) {
    %c0_i32 = arith.constant 0 : i32
    %c0_i32_0 = arith.constant 0 : i32
    return %arg0, %c0_i32 : i32, i32
  }
}

</mosaic_0001>

<llo_original>
// kernel: actor_forward.1
$region0: #{actor_forward.1}
  #allocation0 [shape = 'u32[]', space=smem, size = 0x4, offset = 0x4, fixed_abs, tag = 'smem constant byte address 0x4 - core index']
  #allocation1 [shape = 'u32[144,128]{1,0:T(1,128)}', space=vmem, size = 0x12000, scoped, tag = 'internal scratch']
  %s0 = inlined_call_operand.hbm [shape: f32[16,32], index: 0, kind: input, shape index: {}]
  %s1 = inlined_call_operand.hbm [shape: f32[32,128], index: 1, kind: input, shape index: {}]
  %s2 = inlined_call_operand.hbm [shape: f32[128,128], index: 2, kind: input, shape index: {}]
  %s3 = inlined_call_operand.hbm [shape: f32[128,128], index: 3, kind: input, shape index: {}]
  %s4 = inlined_call_operand.hbm [shape: f32[8,128], index: 4, kind: input, shape index: {}]
  %s5 = inlined_call_operand.vmem [shape: f32[16,128], index: 5, kind: output, shape index: {}]
  %s6 = sld [smem:[#allocation0]]
  $region50: #{actor_forward.1} parent=0
    _
  %s8 = ssub.s32 1, %s6
  %s9 = scalar_select 0, %s8, %s6
  $region1: #{actor_forward.1} parent=0
    #allocation2 [shape = 'u8[8192]{0}', space=vmem, size = 0x2000, scoped, tag = 'input window, operand 0, single buffered']
    #allocation3 [shape = 's32[1]{0}', space=sflag, size = 0x4, scoped, tag = 'scoped memory for actor_forward.1']
    #allocation4 [shape = 'u8[16384]{0}', space=vmem, size = 0x4000, scoped, tag = 'input window, operand 1, single buffered']
    #allocation5 [shape = 's32[1]{0}', space=sflag, size = 0x4, scoped, tag = 'scoped memory for actor_forward.1']
    #allocation6 [shape = 'u8[65536]{0}', space=vmem, size = 0x10000, scoped, tag = 'input window, operand 2, single buffered']
    #allocation7 [shape = 'u8[65536]{0}', space=vmem, size = 0x10000, scoped, tag = 'input window, operand 3, single buffered']
    #allocation8 [shape = 's32[1]{0}', space=sflag, size = 0x4, scoped, tag = 'scoped memory for actor_forward.1']
    #allocation9 [shape = 'u8[4096]{0}', space=vmem, size = 0x1000, scoped, tag = 'input window, operand 4, single buffered']
    %10 = vsyncpa [#allocation3], 0
    %11 = vsyncpa [#allocation5], 0
    %12 = vsyncpa [#allocation8], 0
    // Predicated region
    $region2: #{actor_forward.1} parent=1 // pred_check
      _
    $region3: #{actor_forward.1} parent=1 // pred_check_branch
      %14 = sbr.rel (0) target = $region5
    $region4: #{actor_forward.1} parent=1 // pred_region
      %s16 = ssub.s32 256, 256
      %17 = vsyncadd [#allocation3], %s16
      %s18 = sshll.u32 [#allocation2], 4
      %s19 = int_to_ptr.vmem [resolvable:$true] %s18
      %24 = dma.hbm_to_vmem [thread:$0]  %s0, 256, %s19, [#allocation3], 128, 128, 8
    $region5: #{actor_forward.1} parent=1 // pred_fallthru
      _
    // Predicated region
    $region6: #{actor_forward.1} parent=1 // pred_check
      _
    $region7: #{actor_forward.1} parent=1 // pred_check_branch
      %26 = sbr.rel (0) target = $region9
    $region8: #{actor_forward.1} parent=1 // pred_region
      %s28 = ssub.s32 512, 512
      %29 = vsyncadd [#allocation5], %s28
      %s30 = sshll.u32 [#allocation4], 4
      %s31 = int_to_ptr.vmem [resolvable:$true] %s30
      %36 = dma.hbm_to_vmem [thread:$0]  %s1, 512, %s31, [#allocation5], 128, 128, 8
    $region9: #{actor_forward.1} parent=1 // pred_fallthru
      _
    // Predicated region
    $region10: #{actor_forward.1} parent=1 // pred_check
      _
    $region11: #{actor_forward.1} parent=1 // pred_check_branch
      %38 = sbr.rel (0) target = $region13
    $region12: #{actor_forward.1} parent=1 // pred_region
      %s40 = ssub.s32 2048, 2048
      %41 = vsyncadd [#allocation5], %s40
      %s42 = sshll.u32 [#allocation6], 4
      %s43 = int_to_ptr.vmem [resolvable:$true] %s42
      %48 = dma.hbm_to_vmem [thread:$0]  %s2, 2048, %s43, [#allocation5], 128, 128, 8
    $region13: #{actor_forward.1} parent=1 // pred_fallthru
      _
    // Predicated region
    $region14: #{actor_forward.1} parent=1 // pred_check
      _
    $region15: #{actor_forward.1} parent=1 // pred_check_branch
      %50 = sbr.rel (0) target = $region17
    $region16: #{actor_forward.1} parent=1 // pred_region
      %s52 = ssub.s32 2048, 2048
      %53 = vsyncadd [#allocation8], %s52
      %s54 = sshll.u32 [#allocation7], 4
      %s55 = int_to_ptr.vmem [resolvable:$true] %s54
      %60 = dma.hbm_to_vmem [thread:$0]  %s3, 2048, %s55, [#allocation8], 128, 128, 8
    $region17: #{actor_forward.1} parent=1 // pred_fallthru
      _
    // Predicated region
    $region18: #{actor_forward.1} parent=1 // pred_check
      _
    $region19: #{actor_forward.1} parent=1 // pred_check_branch
      %62 = sbr.rel (0) target = $region21
    $region20: #{actor_forward.1} parent=1 // pred_region
      %s64 = ssub.s32 128, 128
      %65 = vsyncadd [#allocation8], %s64
      %s67 = sshll.u32 [#allocation9], 4
      %s68 = int_to_ptr.vmem [resolvable:$true] %s67
      %70 = dma.hbm_to_vmem [thread:$0]  %s4, 128, %s68, [#allocation8]
    $region21: #{actor_forward.1} parent=1 // pred_fallthru
      _
    // Predicated region
    $region22: #{actor_forward.1} parent=1 // pred_check
      _
    $region23: #{actor_forward.1} parent=1 // pred_check_branch
      %72 = sbr.rel (0) target = $region25
    $region24: #{actor_forward.1} parent=1 // pred_region
      %73 = dma.done [#allocation3], 256
    $region25: #{actor_forward.1} parent=1 // pred_fallthru
      _
    // Predicated region
    $region26: #{actor_forward.1} parent=1 // pred_check
      _
    $region27: #{actor_forward.1} parent=1 // pred_check_branch
      %75 = sbr.rel (0) target = $region29
    $region28: #{actor_forward.1} parent=1 // pred_region
      %76 = dma.done [#allocation5], 512
    $region29: #{actor_forward.1} parent=1 // pred_fallthru
      _
    // Predicated region
    $region30: #{actor_forward.1} parent=1 // pred_check
      _
    $region31: #{actor_forward.1} parent=1 // pred_check_branch
      %78 = sbr.rel (0) target = $region33
    $region32: #{actor_forward.1} parent=1 // pred_region
      %79 = dma.done [#allocation5], 2048
    $region33: #{actor_forward.1} parent=1 // pred_fallthru
      _
    // Predicated region
    $region34: #{actor_forward.1} parent=1 // pred_check
      _
    $region35: #{actor_forward.1} parent=1 // pred_check_branch
      %81 = sbr.rel (0) target = $region37
    $region36: #{actor_forward.1} parent=1 // pred_region
      %82 = dma.done [#allocation8], 2048
    $region37: #{actor_forward.1} parent=1 // pred_fallthru
      _
    // Predicated region
    $region38: #{actor_forward.1} parent=1 // pred_check
      _
    $region39: #{actor_forward.1} parent=1 // pred_check_branch
      %84 = sbr.rel (0) target = $region41
    $region40: #{actor_forward.1} parent=1 // pred_region
      %85 = dma.done [#allocation8], 128
    $region41: #{actor_forward.1} parent=1 // pred_fallthru
      _
    %v86 = vld [vmem:[#allocation9] sm:$0x1]
    %v87 = vld [vmem:[#allocation9 + $0x1] sm:$0x1]
    %v88 = vld [vmem:[#allocation9 + $0x2] sm:$0x1]
    %v89 = vld [vmem:[#allocation9 + $0x3] sm:$0x1]
    %v90 = vld [vmem:[#allocation9 + $0x4] sm:$0x1]
    %v91 = vld [vmem:[#allocation9 + $0x5] sm:$0x1]
    %v92 = vld [vmem:[#allocation9 + $0x6] sm:$0x1]
    %v93 = vld [vmem:[#allocation2] sm:$0xff]
    %v94 = vld [vmem:[#allocation2 + $0x8] sm:$0xff]
    %v95 = vld [vmem:[#allocation4] sm:$0xff]
    %v96 = vld [vmem:[#allocation4 + $0x8] sm:$0xff]
    %v97 = vld [vmem:[#allocation4 + $0x10] sm:$0xff]
    %v98 = vld [vmem:[#allocation4 + $0x18] sm:$0xff]
    %v99 = vlaneseq
    %v100 = vshrl.u32 %v99, 7
    %v101 = vsub.s32 0, %v100
    %v102 = vrot.slane %v86, %v101
    %vm103 = vcmask 261120
    %v105 = vsel %vm103, %v93, 0
    %v108 = vsel %vm103, %v94, 0
    %110 = vmatprep.subr.mxu0 0.0
    %111 = vmatpush1.msra.mxu0 0.0
    %112 = vmatprep.subr.mxu0 0.0
    %113 = vmatpush1.msra.mxu0 0.0
    %114 = vmatprep.subr.mxu0 0.0
    %115 = vmatpush1.msra.mxu0 0.0
    %116 = vmatprep.subr.mxu0 0.0
    %117 = vmatpush1.msra.mxu0 0.0
    %118 = vmatprep.subr.mxu0 0.0
    %119 = vmatpush1.msra.mxu0 0.0
    %120 = vmatprep.subr.mxu0 0.0
    %121 = vmatpush1.msra.mxu0 0.0
    %122 = vmatprep.subr.mxu0 0.0
    %123 = vmatpush1.msra.mxu0 0.0
    %124 = vmatprep.subr.mxu0 0.0
    %125 = vmatpush1.msra.mxu0 0.0
    %126 = vmatprep.subr.mxu0 0.0
    %127 = vmatpush1.msra.mxu0 0.0
    %128 = vmatprep.subr.mxu0 0.0
    %129 = vmatpush1.msra.mxu0 0.0
    %130 = vmatprep.subr.mxu0 0.0
    %131 = vmatpush1.msra.mxu0 0.0
    %132 = vmatprep.subr.mxu0 0.0
    %133 = vmatpush1.msra.mxu0 0.0
    %134 = vmatprep.subr.mxu0 0.0
    %135 = vmatpush1.msra.mxu0 %v98
    %136 = vmatprep.subr.mxu0 0.0
    %137 = vmatpush1.msra.mxu0 %v97
    %138 = vmatprep.subr.mxu0 0.0
    %139 = vmatpush1.msra.mxu0 %v96
    %140 = vmatprep.subr.mxu0 0.0
    %141 = vmatpush1.msra.mxu0 %v95
    %142 = vmatprep.subr.mxu0 0.0
    %143 = vmatpush2.msra.mxu0 0.0
    %144 = vmatprep.subr.mxu0 0.0
    %145 = vmatpush2.msra.mxu0 0.0
    %146 = vmatprep.subr.mxu0 0.0
    %147 = vmatpush2.msra.mxu0 0.0
    %148 = vmatprep.subr.mxu0 0.0
    %149 = vmatpush2.msra.mxu0 0.0
    %150 = vmatprep.subr.mxu0 0.0
    %151 = vmatpush2.msra.mxu0 0.0
    %152 = vmatprep.subr.mxu0 0.0
    %153 = vmatpush2.msra.mxu0 0.0
    %154 = vmatprep.subr.mxu0 0.0
    %155 = vmatpush2.msra.mxu0 0.0
    %156 = vmatprep.subr.mxu0 0.0
    %157 = vmatpush2.msra.mxu0 0.0
    %158 = vmatprep.subr.mxu0 0.0
    %159 = vmatpush2.msra.mxu0 0.0
    %160 = vmatprep.subr.mxu0 0.0
    %161 = vmatpush2.msra.mxu0 0.0
    %162 = vmatprep.subr.mxu0 0.0
    %163 = vmatpush2.msra.mxu0 0.0
    %164 = vmatprep.subr.mxu0 0.0
    %165 = vmatpush2.msra.mxu0 0.0
    %166 = vmatprep.subr.mxu0 0.0
    %167 = vmatpush2.msra.mxu0 0.0
    %168 = vmatprep.subr.mxu0 0.0
    %169 = vmatpush2.msra.mxu0 0.0
    %170 = vmatprep.subr.mxu0 0.0
    %171 = vmatpush2.msra.mxu0 0.0
    %172 = vmatprep.subr.mxu0 0.0
    %173 = vmatpush2.msra.mxu0 0.0
    %174 = vmatprep.mubr.f32.mxu0 0.0
    %175 = vmatmul.mubr.f32.gmra.mxu0 %v105
    %v176 = vpop.f32.mrf.mxu0
    %v177 = vadd.f32 %v102, %v176
    %v178 = vpop.f32.mrf.mxu0
    %179 = vmatprep.mubr.f32.mxu0 0.0
    %180 = vmatmul.mubr.f32.gmra.mxu0 %v108
    %v181 = vpop.f32.mrf.mxu0
    %v182 = vadd.f32 %v102, %v181
    %v183 = vpop.f32.mrf.mxu0
    %184 = vdwg.mxu0
    %185 = vadd.xlane.f32.xlu0 %v177
    %v186 = vpop.xlane.xlu0 %185
    %187 = vadd.xlane.f32.xlu0 %v182
    %v188 = vpop.xlane.xlu0 %187
    %v189 = vmul.f32 %v177, %v177
    %v190 = vmul.f32 %v182, %v182
    %191 = vadd.xlane.f32.xlu0 %v189
    %v192 = vpop.xlane.xlu0 %191
    %193 = vadd.xlane.f32.xlu0 %v190
    %v194 = vpop.xlane.xlu0 %193
    %v195 = vmul.f32 %v186, 0.015625
    %v196 = vmul.f32 %v188, 0.015625
    %v197 = vmul.f32 %v192, 0.015625
    %v198 = vmul.f32 %v194, 0.015625
    %v199 = vmul.f32 %v195, %v195
    %v200 = vmul.f32 %v196, %v196
    %v201 = vsub.f32 %v197, %v199
    %v202 = vsub.f32 %v198, %v200
    %v203 = vmax.f32 %v201, 0.0
    %v204 = vmax.f32 %v202, 0.0
    %v205 = vsub.f32 %v177, %v195
    %v206 = vsub.f32 %v182, %v196
    %v207 = vadd.f32 %v203, 1e-05
    %v208 = vadd.f32 %v204, 1e-05
    %v209 = vrsqrt.pop %v207
    %v210 = vrsqrt.pop %v208
    %v211 = vmul.f32 %v205, %v209
    %v212 = vmul.f32 %v206, %v210
    %v213 = vlaneseq
    %v214 = vshrl.u32 %v213, 7
    %v215 = vsub.s32 0, %v214
    %v216 = vrot.slane %v87, %v215
    %v217 = vmul.f32 %v211, %v216
    %v218 = vmul.f32 %v212, %v216
    %v219 = vlaneseq
    %v220 = vshrl.u32 %v219, 7
    %v221 = vsub.s32 0, %v220
    %v222 = vrot.slane %v88, %v221
    %v223 = vadd.f32 %v217, %v222
    %v224 = vadd.f32 %v218, %v222
    %v225 = vmax.f32 %v223, 0.0
    %v226 = vmax.f32 %v224, 0.0
    %v227 = vld [vmem:[#allocation6] sm:$0xff]
    %v228 = vld [vmem:[#allocation6 + $0x8] sm:$0xff]
    %v229 = vld [vmem:[#allocation6 + $0x10] sm:$0xff]
    %v230 = vld [vmem:[#allocation6 + $0x18] sm:$0xff]
    %v231 = vld [vmem:[#allocation6 + $0x20] sm:$0xff]
    %v232 = vld [vmem:[#allocation6 + $0x28] sm:$0xff]
    %v233 = vld [vmem:[#allocation6 + $0x30] sm:$0xff]
    %v234 = vld [vmem:[#allocation6 + $0x38] sm:$0xff]
    %v235 = vld [vmem:[#allocation6 + $0x40] sm:$0xff]
    %v236 = vld [vmem:[#allocation6 + $0x48] sm:$0xff]
    %v237 = vld [vmem:[#allocation6 + $0x50] sm:$0xff]
    %v238 = vld [vmem:[#allocation6 + $0x58] sm:$0xff]
    %v239 = vld [vmem:[#allocation6 + $0x60] sm:$0xff]
    %v240 = vld [vmem:[#allocation6 + $0x68] sm:$0xff]
    %v241 = vld [vmem:[#allocation6 + $0x70] sm:$0xff]
    %v242 = vld [vmem:[#allocation6 + $0x78] sm:$0xff]
    %v243 = vlaneseq
    %v244 = vshrl.u32 %v243, 7
    %v245 = vsub.s32 0, %v244
    %v246 = vrot.slane %v89, %v245
    %247 = vmatprep.subr.mxu0 0.0
    %248 = vmatpush1.msra.mxu0 %v242
    %249 = vmatprep.subr.mxu0 0.0
    %250 = vmatpush1.msra.mxu0 %v241
    %251 = vmatprep.subr.mxu0 0.0
    %252 = vmatpush1.msra.mxu0 %v240
    %253 = vmatprep.subr.mxu0 0.0
    %254 = vmatpush1.msra.mxu0 %v239
    %255 = vmatprep.subr.mxu0 0.0
    %256 = vmatpush1.msra.mxu0 %v238
    %257 = vmatprep.subr.mxu0 0.0
    %258 = vmatpush1.msra.mxu0 %v237
    %259 = vmatprep.subr.mxu0 0.0
    %260 = vmatpush1.msra.mxu0 %v236
    %261 = vmatprep.subr.mxu0 0.0
    %262 = vmatpush1.msra.mxu0 %v235
    %263 = vmatprep.subr.mxu0 0.0
    %264 = vmatpush1.msra.mxu0 %v234
    %265 = vmatprep.subr.mxu0 0.0
    %266 = vmatpush1.msra.mxu0 %v233
    %267 = vmatprep.subr.mxu0 0.0
    %268 = vmatpush1.msra.mxu0 %v232
    %269 = vmatprep.subr.mxu0 0.0
    %270 = vmatpush1.msra.mxu0 %v231
    %271 = vmatprep.subr.mxu0 0.0
    %272 = vmatpush1.msra.mxu0 %v230
    %273 = vmatprep.subr.mxu0 0.0
    %274 = vmatpush1.msra.mxu0 %v229
    %275 = vmatprep.subr.mxu0 0.0
    %276 = vmatpush1.msra.mxu0 %v228
    %277 = vmatprep.subr.mxu0 0.0
    %278 = vmatpush1.msra.mxu0 %v227
    %279 = vmatprep.subr.mxu0 0.0
    %280 = vmatpush2.msra.mxu0 0.0
    %281 = vmatprep.subr.mxu0 0.0
    %282 = vmatpush2.msra.mxu0 0.0
    %283 = vmatprep.subr.mxu0 0.0
    %284 = vmatpush2.msra.mxu0 0.0
    %285 = vmatprep.subr.mxu0 0.0
    %286 = vmatpush2.msra.mxu0 0.0
    %287 = vmatprep.subr.mxu0 0.0
    %288 = vmatpush2.msra.mxu0 0.0
    %289 = vmatprep.subr.mxu0 0.0
    %290 = vmatpush2.msra.mxu0 0.0
    %291 = vmatprep.subr.mxu0 0.0
    %292 = vmatpush2.msra.mxu0 0.0
    %293 = vmatprep.subr.mxu0 0.0
    %294 = vmatpush2.msra.mxu0 0.0
    %295 = vmatprep.subr.mxu0 0.0
    %296 = vmatpush2.msra.mxu0 0.0
    %297 = vmatprep.subr.mxu0 0.0
    %298 = vmatpush2.msra.mxu0 0.0
    %299 = vmatprep.subr.mxu0 0.0
    %300 = vmatpush2.msra.mxu0 0.0
    %301 = vmatprep.subr.mxu0 0.0
    %302 = vmatpush2.msra.mxu0 0.0
    %303 = vmatprep.subr.mxu0 0.0
    %304 = vmatpush2.msra.mxu0 0.0
    %305 = vmatprep.subr.mxu0 0.0
    %306 = vmatpush2.msra.mxu0 0.0
    %307 = vmatprep.subr.mxu0 0.0
    %308 = vmatpush2.msra.mxu0 0.0
    %309 = vmatprep.subr.mxu0 0.0
    %310 = vmatpush2.msra.mxu0 0.0
    %311 = vmatprep.mubr.f32.mxu0 0.0
    %312 = vmatmul.mubr.f32.gmra.mxu0 %v225
    %v313 = vpop.f32.mrf.mxu0
    %v314 = vadd.f32 %v246, %v313
    %v315 = vpop.f32.mrf.mxu0
    %316 = vmatprep.mubr.f32.mxu0 0.0
    %317 = vmatmul.mubr.f32.gmra.mxu0 %v226
    %v318 = vpop.f32.mrf.mxu0
    %v319 = vadd.f32 %v246, %v318
    %v320 = vpop.f32.mrf.mxu0
    %321 = vdwg.mxu0
    %322 = vadd.xlane.f32.xlu0 %v314
    %v323 = vpop.xlane.xlu0 %322
    %324 = vadd.xlane.f32.xlu0 %v319
    %v325 = vpop.xlane.xlu0 %324
    %v326 = vmul.f32 %v314, %v314
    %v327 = vmul.f32 %v319, %v319
    %328 = vadd.xlane.f32.xlu0 %v326
    %v329 = vpop.xlane.xlu0 %328
    %330 = vadd.xlane.f32.xlu0 %v327
    %v331 = vpop.xlane.xlu0 %330
    %v332 = vmul.f32 %v323, 0.015625
    %v333 = vmul.f32 %v325, 0.015625
    %v334 = vmul.f32 %v329, 0.015625
    %v335 = vmul.f32 %v331, 0.015625
    %v336 = vmul.f32 %v332, %v332
    %v337 = vmul.f32 %v333, %v333
    %v338 = vsub.f32 %v334, %v336
    %v339 = vsub.f32 %v335, %v337
    %v340 = vmax.f32 %v338, 0.0
    %v341 = vmax.f32 %v339, 0.0
    %v342 = vsub.f32 %v314, %v332
    %v343 = vsub.f32 %v319, %v333
    %v344 = vadd.f32 %v340, 1e-05
    %v345 = vadd.f32 %v341, 1e-05
    %v346 = vrsqrt.pop %v344
    %v347 = vrsqrt.pop %v345
    %v348 = vmul.f32 %v342, %v346
    %v349 = vmul.f32 %v343, %v347
    %v350 = vlaneseq
    %v351 = vshrl.u32 %v350, 7
    %v352 = vsub.s32 0, %v351
    %v353 = vrot.slane %v90, %v352
    %v354 = vmul.f32 %v348, %v353
    %v355 = vmul.f32 %v349, %v353
    %v356 = vlaneseq
    %v357 = vshrl.u32 %v356, 7
    %v358 = vsub.s32 0, %v357
    %v359 = vrot.slane %v91, %v358
    %v360 = vadd.f32 %v354, %v359
    %v361 = vadd.f32 %v355, %v359
    %v362 = vmax.f32 %v360, 0.0
    %v363 = vmax.f32 %v361, 0.0
    %v364 = vld [vmem:[#allocation7] sm:$0xff]
    %v365 = vld [vmem:[#allocation7 + $0x8] sm:$0xff]
    %v366 = vld [vmem:[#allocation7 + $0x10] sm:$0xff]
    %v367 = vld [vmem:[#allocation7 + $0x18] sm:$0xff]
    %v368 = vld [vmem:[#allocation7 + $0x20] sm:$0xff]
    %v369 = vld [vmem:[#allocation7 + $0x28] sm:$0xff]
    %v370 = vld [vmem:[#allocation7 + $0x30] sm:$0xff]
    %v371 = vld [vmem:[#allocation7 + $0x38] sm:$0xff]
    %v372 = vld [vmem:[#allocation7 + $0x40] sm:$0xff]
    %v373 = vld [vmem:[#allocation7 + $0x48] sm:$0xff]
    %v374 = vld [vmem:[#allocation7 + $0x50] sm:$0xff]
    %v375 = vld [vmem:[#allocation7 + $0x58] sm:$0xff]
    %v376 = vld [vmem:[#allocation7 + $0x60] sm:$0xff]
    %v377 = vld [vmem:[#allocation7 + $0x68] sm:$0xff]
    %v378 = vld [vmem:[#allocation7 + $0x70] sm:$0xff]
    %v379 = vld [vmem:[#allocation7 + $0x78] sm:$0xff]
    %v380 = vlaneseq
    %v381 = vshrl.u32 %v380, 7
    %v382 = vsub.s32 0, %v381
    %v383 = vrot.slane %v92, %v382
    %384 = vmatprep.subr.mxu0 0.0
    %385 = vmatpush1.msra.mxu0 %v379
    %386 = vmatprep.subr.mxu0 0.0
    %387 = vmatpush1.msra.mxu0 %v378
    %388 = vmatprep.subr.mxu0 0.0
    %389 = vmatpush1.msra.mxu0 %v377
    %390 = vmatprep.subr.mxu0 0.0
    %391 = vmatpush1.msra.mxu0 %v376
    %392 = vmatprep.subr.mxu0 0.0
    %393 = vmatpush1.msra.mxu0 %v375
    %394 = vmatprep.subr.mxu0 0.0
    %395 = vmatpush1.msra.mxu0 %v374
    %396 = vmatprep.subr.mxu0 0.0
    %397 = vmatpush1.msra.mxu0 %v373
    %398 = vmatprep.subr.mxu0 0.0
    %399 = vmatpush1.msra.mxu0 %v372
    %400 = vmatprep.subr.mxu0 0.0
    %401 = vmatpush1.msra.mxu0 %v371
    %402 = vmatprep.subr.mxu0 0.0
    %403 = vmatpush1.msra.mxu0 %v370
    %404 = vmatprep.subr.mxu0 0.0
    %405 = vmatpush1.msra.mxu0 %v369
    %406 = vmatprep.subr.mxu0 0.0
    %407 = vmatpush1.msra.mxu0 %v368
    %408 = vmatprep.subr.mxu0 0.0
    %409 = vmatpush1.msra.mxu0 %v367
    %410 = vmatprep.subr.mxu0 0.0
    %411 = vmatpush1.msra.mxu0 %v366
    %412 = vmatprep.subr.mxu0 0.0
    %413 = vmatpush1.msra.mxu0 %v365
    %414 = vmatprep.subr.mxu0 0.0
    %415 = vmatpush1.msra.mxu0 %v364
    %416 = vmatprep.subr.mxu0 0.0
    %417 = vmatpush2.msra.mxu0 0.0
    %418 = vmatprep.subr.mxu0 0.0
    %419 = vmatpush2.msra.mxu0 0.0
    %420 = vmatprep.subr.mxu0 0.0
    %421 = vmatpush2.msra.mxu0 0.0
    %422 = vmatprep.subr.mxu0 0.0
    %423 = vmatpush2.msra.mxu0 0.0
    %424 = vmatprep.subr.mxu0 0.0
    %425 = vmatpush2.msra.mxu0 0.0
    %426 = vmatprep.subr.mxu0 0.0
    %427 = vmatpush2.msra.mxu0 0.0
    %428 = vmatprep.subr.mxu0 0.0
    %429 = vmatpush2.msra.mxu0 0.0
    %430 = vmatprep.subr.mxu0 0.0
    %431 = vmatpush2.msra.mxu0 0.0
    %432 = vmatprep.subr.mxu0 0.0
    %433 = vmatpush2.msra.mxu0 0.0
    %434 = vmatprep.subr.mxu0 0.0
    %435 = vmatpush2.msra.mxu0 0.0
    %436 = vmatprep.subr.mxu0 0.0
    %437 = vmatpush2.msra.mxu0 0.0
    %438 = vmatprep.subr.mxu0 0.0
    %439 = vmatpush2.msra.mxu0 0.0
    %440 = vmatprep.subr.mxu0 0.0
    %441 = vmatpush2.msra.mxu0 0.0
    %442 = vmatprep.subr.mxu0 0.0
    %443 = vmatpush2.msra.mxu0 0.0
    %444 = vmatprep.subr.mxu0 0.0
    %445 = vmatpush2.msra.mxu0 0.0
    %446 = vmatprep.subr.mxu0 0.0
    %447 = vmatpush2.msra.mxu0 0.0
    %448 = vmatprep.mubr.f32.mxu0 0.0
    %449 = vmatmul.mubr.f32.gmra.mxu0 %v362
    %v450 = vpop.f32.mrf.mxu0
    %v451 = vadd.f32 %v383, %v450
    %v452 = vpop.f32.mrf.mxu0
    %453 = vmatprep.mubr.f32.mxu0 0.0
    %454 = vmatmul.mubr.f32.gmra.mxu0 %v363
    %v455 = vpop.f32.mrf.mxu0
    %v456 = vadd.f32 %v383, %v455
    %v457 = vpop.f32.mrf.mxu0
    %458 = vdwg.mxu0
    %v459 = vtanh.pop %v451
    %v460 = vtanh.pop %v456
    %461 = vst [vmem:[%s5] sm:$0xff] %v459
    %462 = vst [vmem:[%s5 + $0x8] sm:$0xff] %v460
    // Predicated region
    $region42: #{actor_forward.1} parent=1 // pred_check
      _
    $region43: #{actor_forward.1} parent=1 // pred_check_branch
      %464 = sbr.rel (0) target = $region45
    $region44: #{actor_forward.1} parent=1 // pred_region
      _
    $region45: #{actor_forward.1} parent=1 // pred_fallthru
      _
    // Predicated region
    $region46: #{actor_forward.1} parent=1 // pred_check
      _
    $region47: #{actor_forward.1} parent=1 // pred_check_branch
      %466 = sbr.rel (0) target = $region49
    $region48: #{actor_forward.1} parent=1 // pred_region
      _
    $region49: #{actor_forward.1} parent=1 // pred_fallthru
      _
    %467 = vsyncpa [#allocation3], 1
    %468 = vsyncpa [#allocation5], 1
    %469 = vsyncpa [#allocation8], 1

</llo_original>
